<compile_context>
chip_gen: v7x
topology: tpu7x:2x2x1
jax: 0.10.0
libtpu: 0.0.40
codegen_flags: <defaults>
</compile_context>

<pallas_src>
import functools

import jax
import jax.numpy as jnp
from jax import lax
from jax.experimental import pallas as pl
from jax.experimental.pallas import tpu as pltpu


# ----------------------------------------------------------------------------
# Generation-aware VMEM budgets
# ----------------------------------------------------------------------------
def _vmem_config():
    """Returns (vmem_limit_bytes, block_budget_bytes, two_tensorcores)."""
    cap = None
    try:
        info = pltpu.get_tpu_info()
        cap = getattr(info, "vmem_capacity_bytes", None)
    except Exception:
        cap = None
    if cap is None:
        cap = 64 * 1024 * 1024  # conservative default (v7x-like)

    if cap >= 96 * 1024 * 1024:
        # v5e / v6e: 128 MiB VMEM, single TensorCore per chip.
        vmem_limit = 96 * 1024 * 1024
        two_tc = False
    else:
        # v7x: 64 MiB VMEM per TC, two TensorCores per chip.
        vmem_limit = 48 * 1024 * 1024
        two_tc = True
    block_budget = int(vmem_limit * 0.75)
    return vmem_limit, block_budget, two_tc


def _choose_batch_block(n, per_sample_bytes, budget, two_tc):
    """Largest batch block (divisor of n) fitting the budget.

    Returns 0 if even a single sample does not fit (caller falls back to the
    two-pass path).  On two-TensorCore chips, prefer a block that yields an
    EVEN number of grid steps so the megacore split stays balanced.
    """
    nb_max = budget // max(per_sample_bytes, 1)
    if nb_max < 1:
        return 0
    nb_max = int(min(nb_max, n))
    divisors = [d for d in range(1, nb_max + 1) if n % d == 0]
    best = divisors[-1]
    if two_tc and n >= 2:
        even = [d for d in divisors if (n // d) % 2 == 0]
        if even:
            best = even[-1]
        else:
            # n odd: no even step count possible; at least keep >= 2 steps.
            le_half = [d for d in divisors if d <= n // 2]
            if le_half:
                best = le_half[-1]
    return best


# ----------------------------------------------------------------------------
# Single-pass fused kernel (whole (nb, C, HW) slab per grid step)
# ----------------------------------------------------------------------------
def _iln_kernel(x_ref, params_ref, o_ref, *, eps: float):
    """Fused ILN: out = a_{n,c} * x + b_{n,c}.

    x_ref      : (Nb, C, HW)  — spatial axis on lanes, unpadded.
    params_ref : (3, C, 1)    — rows = [gamma*rho, gamma*(1-rho), beta].
    """
    x = x_ref[...].astype(jnp.float32)                 # (Nb, C, HW)
    nb, c, hw = x.shape

    inv_hw = 1.0 / hw
    inv_in = (1.0 / (hw - 1)) if hw > 1 else float("nan")       # torch.var: nan
    inv_ln = (1.0 / (c * hw - 1)) if c * hw > 1 else float("nan")

    # ---- Instance-norm stats: reduce the spatial (lane) axis ---------------
    in_mean = jnp.sum(x, axis=2, keepdims=True) * inv_hw        # (Nb, C, 1)
    diff = x - in_mean
    in_sumsq = jnp.sum(diff * diff, axis=2, keepdims=True)      # (Nb, C, 1)
    in_var = in_sumsq * inv_in                                  # unbiased

    # ---- Layer-norm stats derived exactly from the instance-norm stats -----
    #   sum_{c,hw}(x - ln_mean)^2 = sum_c [ in_sumsq_c + HW*(in_mean_c - ln_mean)^2 ]
    ln_mean = jnp.mean(in_mean, axis=1, keepdims=True)          # (Nb, 1, 1)
    dm = in_mean - ln_mean
    ln_sumsq = jnp.sum(in_sumsq + hw * dm * dm, axis=1, keepdims=True)
    ln_var = ln_sumsq * inv_ln                                  # (Nb, 1, 1)

    # ---- Fold everything into one per-(sample, channel) affine -------------
    rs_in = lax.rsqrt(in_var + eps)                             # EUP
    rs_ln = lax.rsqrt(ln_var + eps)                             # EUP

    p = params_ref[...].astype(jnp.float32)                     # (3, C, 1)
    grho, g1m, beta = p[0:1], p[1:2], p[2:3]                    # (1, C, 1) each

    t_in = grho * rs_in                                         # (Nb, C, 1)
    t_ln = g1m * rs_ln
    a = t_in + t_ln
    b = beta - t_in * in_mean - t_ln * ln_mean

    # Single full-slab pass against the NATIVE-dtype load (no f32 x copy kept
    # live through the apply phase for 16-bit inputs).
    o_ref[...] = (a * x_ref[...] + b).astype(o_ref.dtype)


# ----------------------------------------------------------------------------
# Two-pass fallback for samples too large to hold (C, HW) in VMEM
# ----------------------------------------------------------------------------
def _stats_kernel(x_ref, sum_ref, sumsq_ref, *, hw: int):
    """Accumulate per-(n, c) sum and sum-of-squares across HW tiles."""
    t = pl.program_id(1)

    @pl.when(t == 0)
    def _():
        sum_ref[...] = jnp.zeros_like(sum_ref)
        sumsq_ref[...] = jnp.zeros_like(sumsq_ref)

    x = x_ref[...].astype(jnp.float32)                  # (1, C, thw)
    thw = x.shape[2]
    if hw % thw != 0:
        # Last tile is partial: out-of-bounds lanes hold undefined data.
        lane = lax.broadcasted_iota(jnp.int32, x.shape, 2)
        valid = hw - t * thw
        x = jnp.where(lane < valid, x, 0.0)

    sum_ref[...] += jnp.sum(x, axis=2, keepdims=True)
    sumsq_ref[...] += jnp.sum(x * x, axis=2, keepdims=True)


def _apply_kernel(x_ref, a_ref, b_ref, o_ref):
    """out = a_{n,c} * x + b_{n,c} on one (1, C, thw) tile."""
    o_ref[...] = (a_ref[...] * x_ref[...] + b_ref[...]).astype(o_ref.dtype)


def _iln_two_pass(x_flat, grho, g1mrho, beta_f, eps, budget, vmem_limit):
    N, C, HW = x_flat.shape
    itemsize = x_flat.dtype.itemsize

    # Per spatial column: double-buffered in + out blocks + ~2 f32 temps.
    per_col = C * (4 * itemsize + 2 * 4)
    thw = max(128, (budget // max(per_col, 1)) // 128 * 128)
    if thw >= HW:
        thw = HW
    T = pl.cdiv(HW, thw)

    # ---- Pass 1: per-(n, c) sum / sumsq across HW tiles ---------------------
    sums, sumsqs = pl.pallas_call(
        functools.partial(_stats_kernel, hw=HW),
        out_shape=(jax.ShapeDtypeStruct((N, C, 1), jnp.float32),
                   jax.ShapeDtypeStruct((N, C, 1), jnp.float32)),
        grid_spec=pltpu.PrefetchScalarGridSpec(
            num_scalar_prefetch=0,
            grid=(N, T),
            in_specs=[pl.BlockSpec((1, C, thw), lambda n, t: (n, 0, t))],
            out_specs=[pl.BlockSpec((1, C, 1), lambda n, t: (n, 0, 0)),
                       pl.BlockSpec((1, C, 1), lambda n, t: (n, 0, 0))],
        ),
        compiler_params=pltpu.CompilerParams(
            dimension_semantics=("parallel", "arbitrary"),
            vmem_limit_bytes=vmem_limit,
        ),
    )(x_flat)

    # ---- Tiny per-(n, c) stats -> folded affine (negligible XLA ops) --------
    denom_in = float(HW - 1) if HW > 1 else float("nan")
    denom_ln = float(C * HW - 1) if C * HW > 1 else float("nan")
    in_mean = sums * (1.0 / HW)                                   # (N, C, 1)
    in_var = (sumsqs - HW * in_mean * in_mean) * (1.0 / denom_in)
    ln_mean = jnp.mean(in_mean, axis=1, keepdims=True)            # (N, 1, 1)
    ln_sumsq = jnp.sum(sumsqs, axis=1, keepdims=True) - (C * HW) * ln_mean * ln_mean
    ln_var = ln_sumsq * (1.0 / denom_ln)

    rs_in = lax.rsqrt(in_var + eps)
    rs_ln = lax.rsqrt(ln_var + eps)
    t_in = grho * rs_in                                           # (N, C, 1)
    t_ln = g1mrho * rs_ln
    a = t_in + t_ln
    b = beta_f - t_in * in_mean - t_ln * ln_mean

    # ---- Pass 2: apply the folded affine tile by tile -----------------------
    out_flat = pl.pallas_call(
        _apply_kernel,
        out_shape=jax.ShapeDtypeStruct((N, C, HW), x_flat.dtype),
        grid_spec=pltpu.PrefetchScalarGridSpec(
            num_scalar_prefetch=0,
            grid=(N, T),
            in_specs=[pl.BlockSpec((1, C, thw), lambda n, t: (n, 0, t)),
                      pl.BlockSpec((1, C, 1), lambda n, t: (n, 0, 0)),
                      pl.BlockSpec((1, C, 1), lambda n, t: (n, 0, 0))],
            out_specs=pl.BlockSpec((1, C, thw), lambda n, t: (n, 0, t)),
        ),
        compiler_params=pltpu.CompilerParams(
            dimension_semantics=("parallel", "parallel"),
            vmem_limit_bytes=vmem_limit,
        ),
    )(x_flat, a, b)
    return out_flat


# ----------------------------------------------------------------------------
# Public wrapper
# ----------------------------------------------------------------------------
def iln_forward(x, rho, gamma, beta, eps=1e-5, *, max_block_bytes=None):
    """ILN forward.  x: (N, C, H, W).  rho/gamma/beta: (1, C, 1, 1)."""
    N, C, H, W = x.shape
    HW = H * W
    itemsize = x.dtype.itemsize

    # Spatial axis on lanes; NO padding (pad/slice HBM round trips removed).
    x_flat = x.reshape(N, C, HW)

    # Pre-fold params outside the kernel (tiny XLA op, constant across grid),
    # concatenated into ONE (3, C, 1) input => one per-step DMA instead of 3.
    rho_f = rho.reshape(1, C, 1).astype(jnp.float32)
    gamma_f = gamma.reshape(1, C, 1).astype(jnp.float32)
    beta_f = beta.reshape(1, C, 1).astype(jnp.float32)
    grho = gamma_f * rho_f
    g1mrho = gamma_f * (1.0 - rho_f)
    params = jnp.concatenate([grho, g1mrho, beta_f], axis=0)      # (3, C, 1)

    vmem_limit, budget, two_tc = _vmem_config()
    if max_block_bytes is not None:
        budget = int(max_block_bytes)

    # f32-aware accounting: double-buffered in/out blocks in the native dtype
    # plus ~3 live f32 full slabs inside the kernel body.
    per_sample_bytes = C * HW * (4 * itemsize + 3 * 4)
    nb = _choose_batch_block(N, per_sample_bytes, budget, two_tc)

    if nb >= 1:
        out_flat = pl.pallas_call(
            functools.partial(_iln_kernel, eps=float(eps)),
            out_shape=jax.ShapeDtypeStruct((N, C, HW), x.dtype),
            grid_spec=pltpu.PrefetchScalarGridSpec(
                num_scalar_prefetch=0,
                grid=(N // nb,),
                in_specs=[
                    pl.BlockSpec((nb, C, HW), lambda n: (n, 0, 0)),
                    pl.BlockSpec((3, C, 1), lambda n: (0, 0, 0)),
                ],
                out_specs=pl.BlockSpec((nb, C, HW), lambda n: (n, 0, 0)),
            ),
            compiler_params=pltpu.CompilerParams(
                dimension_semantics=("parallel",),
                vmem_limit_bytes=vmem_limit,
            ),
        )(x_flat, params)
    else:
        # Single sample too big for one resident slab: two-pass scheme.
        out_flat = _iln_two_pass(x_flat, grho, g1mrho, beta_f, float(eps),
                                 budget, vmem_limit)

    return out_flat.reshape(N, C, H, W)


# ----------------------------------------------------------------------------
# Pure-JAX reference mirroring the PyTorch forward (unbiased variance)
# ----------------------------------------------------------------------------
def iln_reference(x, rho, gamma, beta, eps=1e-5):
    N, C, H, W = x.shape
    in_mean = jnp.mean(x, axis=(2, 3), keepdims=True)
    in_var = jnp.sum((x - in_mean) ** 2, axis=(2, 3), keepdims=True) / (H * W - 1)
    out_in = (x - in_mean) / jnp.sqrt(in_var + eps)
    ln_mean = jnp.mean(x, axis=(1, 2, 3), keepdims=True)
    ln_var = jnp.sum((x - ln_mean) ** 2, axis=(1, 2, 3), keepdims=True) / (C * H * W - 1)
    out_ln = (x - ln_mean) / jnp.sqrt(ln_var + eps)
    out = rho * out_in + (1 - rho) * out_ln
    return out * gamma + beta


if __name__ == "__main__":
    key = jax.random.PRNGKey(0)
    k_x, k_rho, k_g, k_b, k_x2, k_x3 = jax.random.split(key, 6)

    # --- test 1: module-init params (rho=0, gamma=1, beta=0) -----------------
    N, C, H, W = 2, 4, 16, 16
    x = jax.random.normal(k_x, (N, C, H, W), dtype=jnp.float32)
    rho0 = jnp.zeros((1, C, 1, 1), jnp.float32)
    gamma0 = jnp.ones((1, C, 1, 1), jnp.float32)
    beta0 = jnp.zeros((1, C, 1, 1), jnp.float32)

    out = jax.block_until_ready(iln_forward(x, rho0, gamma0, beta0))
    ref = iln_reference(x, rho0, gamma0, beta0)
    assert out.shape == (N, C, H, W)
    assert jnp.allclose(out, ref, atol=1e-4, rtol=1e-4), "mismatch (init params)"

    # --- test 2: non-trivial rho/gamma/beta (IN/LN mixture) ------------------
    rho = jax.nn.sigmoid(jax.random.normal(k_rho, (1, C, 1, 1), jnp.float32))
    gamma = 1.0 + 0.1 * jax.random.normal(k_g, (1, C, 1, 1), jnp.float32)
    beta = 0.1 * jax.random.normal(k_b, (1, C, 1, 1), jnp.float32)
    out2 = jax.block_until_ready(iln_forward(x, rho, gamma, beta))
    ref2 = iln_reference(x, rho, gamma, beta)
    assert jnp.allclose(out2, ref2, atol=1e-4, rtol=1e-4), "mismatch (mixed params)"

    # --- test 3: non-128-multiple spatial size, unpadded single-pass path ----
    x3 = jax.random.normal(k_x2, (2, 4, 10, 10), dtype=jnp.float32)
    out3 = jax.block_until_ready(iln_forward(x3, rho, gamma, beta))
    ref3 = iln_reference(x3, rho, gamma, beta)
    assert jnp.allclose(out3, ref3, atol=1e-4, rtol=1e-4), "mismatch (unpadded HW)"

    # --- test 4: forced two-pass fallback (tile-exact HW) --------------------
    out4 = jax.block_until_ready(
        iln_forward(x, rho, gamma, beta, max_block_bytes=1024))
    assert jnp.allclose(out4, ref2, atol=1e-4, rtol=1e-4), "mismatch (two-pass)"

    # --- test 5: forced two-pass fallback with a partial last HW tile --------
    x5 = jax.random.normal(k_x3, (1, 4, 18, 18), dtype=jnp.float32)
    out5 = jax.block_until_ready(
        iln_forward(x5, rho, gamma, beta, max_block_bytes=1024))
    ref5 = iln_reference(x5, rho, gamma, beta)
    assert jnp.allclose(out5, ref5, atol=1e-4, rtol=1e-4), "mismatch (two-pass masked)"

    # --- test 6: bf16 input (native-dtype apply path) ------------------------
    x6 = x.astype(jnp.bfloat16)
    out6 = jax.block_until_ready(iln_forward(x6, rho, gamma, beta))
    ref6 = iln_reference(x6.astype(jnp.float32), rho, gamma, beta)
    assert jnp.allclose(out6.astype(jnp.float32), ref6, atol=5e-2, rtol=5e-2), \
        "mismatch (bf16)"

    print("KERNEL_OK")
</pallas_src>

<mosaic_0001>
module attributes {stable_mosaic.version = 11 : i64} {
  func.func @_iln_kernel(%arg0: i32, %arg1: memref<1x4x256xf32, #tpu.memory_space<vmem>>, %arg2: memref<3x4x1xf32, #tpu.memory_space<vmem>>, %arg3: memref<1x4x256xf32, #tpu.memory_space<vmem>>) attributes {dimension_semantics = [#tpu.dimension_semantics<parallel>], iteration_bounds = array<i64: 2>, scalar_prefetch = 0 : i64, scratch_operands = 0 : i64, tpu.core_type = #tpu.core_type<tc>, window_params = [{transform_indices = @transform_0, window_bounds = array<i64: 1, 4, 256>}, {pipeline_mode = #tpu.pipeline_mode<synchronous>, transform_indices = @transform_1, window_bounds = array<i64: 3, 4, 1>}, {transform_indices = @transform_2, window_bounds = array<i64: 1, 4, 256>}]} {
    %c0 = arith.constant 0 : index
    %c0_0 = arith.constant 0 : index
    %c0_1 = arith.constant 0 : index
    %0 = vector.load %arg1[%c0, %c0_0, %c0_1] : memref<1x4x256xf32, #tpu.memory_space<vmem>>, vector<1x4x256xf32>
    %cst = arith.constant dense<0.000000e+00> : vector<1x4xf32>
    %1 = vector.multi_reduction <add>, %0, %cst [2] : vector<1x4x256xf32> to vector<1x4xf32>
    %2 = vector.shape_cast %1 : vector<1x4xf32> to vector<1x4x1xf32>
    %cst_2 = arith.constant 3.906250e-03 : f32
    %3 = vector.broadcast %cst_2 : f32 to vector<1x4x1xf32>
    %4 = arith.mulf %2, %3 : vector<1x4x1xf32>
    %5 = vector.broadcast %4 : vector<1x4x1xf32> to vector<1x4x256xf32>
    %6 = arith.subf %0, %5 : vector<1x4x256xf32>
    %7 = arith.mulf %6, %6 : vector<1x4x256xf32>
    %cst_3 = arith.constant dense<0.000000e+00> : vector<1x4xf32>
    %8 = vector.multi_reduction <add>, %7, %cst_3 [2] : vector<1x4x256xf32> to vector<1x4xf32>
    %9 = vector.shape_cast %8 : vector<1x4xf32> to vector<1x4x1xf32>
    %cst_4 = arith.constant 0.00392156886 : f32
    %10 = vector.broadcast %cst_4 : f32 to vector<1x4x1xf32>
    %11 = arith.mulf %9, %10 : vector<1x4x1xf32>
    %cst_5 = arith.constant dense<0.000000e+00> : vector<1x1xf32>
    %12 = vector.multi_reduction <add>, %4, %cst_5 [1] : vector<1x4x1xf32> to vector<1x1xf32>
    %13 = vector.shape_cast %12 : vector<1x1xf32> to vector<1x1x1xf32>
    %cst_6 = arith.constant 4.000000e+00 : f32
    %14 = vector.broadcast %cst_6 : f32 to vector<1x1x1xf32>
    %15 = arith.divf %13, %14 : vector<1x1x1xf32>
    %16 = vector.broadcast %15 : vector<1x1x1xf32> to vector<1x4x1xf32>
    %17 = arith.subf %4, %16 : vector<1x4x1xf32>
    %cst_7 = arith.constant 2.560000e+02 : f32
    %18 = vector.broadcast %cst_7 : f32 to vector<1x4x1xf32>
    %19 = arith.mulf %18, %17 : vector<1x4x1xf32>
    %20 = arith.mulf %19, %17 : vector<1x4x1xf32>
    %21 = arith.addf %9, %20 : vector<1x4x1xf32>
    %cst_8 = arith.constant dense<0.000000e+00> : vector<1x1xf32>
    %22 = vector.multi_reduction <add>, %21, %cst_8 [1] : vector<1x4x1xf32> to vector<1x1xf32>
    %23 = vector.shape_cast %22 : vector<1x1xf32> to vector<1x1x1xf32>
    %cst_9 = arith.constant 9.77517105E-4 : f32
    %24 = vector.broadcast %cst_9 : f32 to vector<1x1x1xf32>
    %25 = arith.mulf %23, %24 : vector<1x1x1xf32>
    %cst_10 = arith.constant 9.99999974E-6 : f32
    %26 = vector.broadcast %cst_10 : f32 to vector<1x4x1xf32>
    %27 = arith.addf %11, %26 : vector<1x4x1xf32>
    %28 = math.rsqrt %27 : vector<1x4x1xf32>
    %cst_11 = arith.constant 9.99999974E-6 : f32
    %29 = vector.broadcast %cst_11 : f32 to vector<1x1x1xf32>
    %30 = arith.addf %25, %29 : vector<1x1x1xf32>
    %31 = math.rsqrt %30 : vector<1x1x1xf32>
    %c0_12 = arith.constant 0 : index
    %c0_13 = arith.constant 0 : index
    %c0_14 = arith.constant 0 : index
    %32 = vector.load %arg2[%c0_12, %c0_13, %c0_14] : memref<3x4x1xf32, #tpu.memory_space<vmem>>, vector<3x4x1xf32>
    %33 = vector.extract_strided_slice %32 {offsets = [0, 0, 0], sizes = [1, 4, 1], strides = [1, 1, 1]} : vector<3x4x1xf32> to vector<1x4x1xf32>
    %34 = vector.extract_strided_slice %32 {offsets = [1, 0, 0], sizes = [1, 4, 1], strides = [1, 1, 1]} : vector<3x4x1xf32> to vector<1x4x1xf32>
    %35 = vector.extract_strided_slice %32 {offsets = [2, 0, 0], sizes = [1, 4, 1], strides = [1, 1, 1]} : vector<3x4x1xf32> to vector<1x4x1xf32>
    %36 = arith.mulf %33, %28 : vector<1x4x1xf32>
    %37 = vector.broadcast %31 : vector<1x1x1xf32> to vector<1x4x1xf32>
    %38 = arith.mulf %34, %37 : vector<1x4x1xf32>
    %39 = arith.addf %36, %38 : vector<1x4x1xf32>
    %40 = arith.mulf %36, %4 : vector<1x4x1xf32>
    %41 = arith.subf %35, %40 : vector<1x4x1xf32>
    %42 = vector.broadcast %15 : vector<1x1x1xf32> to vector<1x4x1xf32>
    %43 = arith.mulf %38, %42 : vector<1x4x1xf32>
    %44 = arith.subf %41, %43 : vector<1x4x1xf32>
    %c0_15 = arith.constant 0 : index
    %c0_16 = arith.constant 0 : index
    %c0_17 = arith.constant 0 : index
    %45 = vector.load %arg1[%c0_15, %c0_16, %c0_17] : memref<1x4x256xf32, #tpu.memory_space<vmem>>, vector<1x4x256xf32>
    %46 = vector.broadcast %39 : vector<1x4x1xf32> to vector<1x4x256xf32>
    %47 = arith.mulf %46, %45 : vector<1x4x256xf32>
    %48 = vector.broadcast %44 : vector<1x4x1xf32> to vector<1x4x256xf32>
    %49 = arith.addf %47, %48 : vector<1x4x256xf32>
    %c0_18 = arith.constant 0 : index
    %c0_19 = arith.constant 0 : index
    %c0_20 = arith.constant 0 : index
    %50 = vector.load %arg3[%c0_18, %c0_19, %c0_20] : memref<1x4x256xf32, #tpu.memory_space<vmem>>, vector<1x4x256xf32>
    tpu.vector_store %arg3[%c0_18, %c0_19, %c0_20], %49 {strides = array<i32>} : memref<1x4x256xf32, #tpu.memory_space<vmem>>, vector<1x4x256xf32>,
    return
  }
  func.func @transform_0(%arg0: i32) -> (i32, i32, i32) {
    %c0_i32 = arith.constant 0 : i32
    %c0_i32_0 = arith.constant 0 : i32
    %c0_i32_1 = arith.constant 0 : i32
    return %arg0, %c0_i32, %c0_i32_0 : i32, i32, i32
  }
  func.func @transform_1(%arg0: i32) -> (i32, i32, i32) {
    %c0_i32 = arith.constant 0 : i32
    %c0_i32_0 = arith.constant 0 : i32
    %c0_i32_1 = arith.constant 0 : i32
    %c0_i32_2 = arith.constant 0 : i32
    return %c0_i32, %c0_i32_0, %c0_i32_1 : i32, i32, i32
  }
  func.func @transform_2(%arg0: i32) -> (i32, i32, i32) {
    %c0_i32 = arith.constant 0 : i32
    %c0_i32_0 = arith.constant 0 : i32
    %c0_i32_1 = arith.constant 0 : i32
    return %arg0, %c0_i32, %c0_i32_0 : i32, i32, i32
  }
}

</mosaic_0001>

<llo_original>
// kernel: tpu_custom_call.1
$region0: #{tpu_custom_call.1}
  #allocation0 [shape = 'u32[]', space=smem, size = 0x4, offset = 0x4, fixed_abs, tag = 'smem constant byte address 0x4 - core index']
  #allocation1 [shape = 'u32[144,128]{1,0:T(1,128)}', space=vmem, size = 0x12000, scoped, tag = 'internal scratch']
  %s0 = inlined_call_operand.hbm [shape: f32[2,4,256], index: 0, kind: input, shape index: {}]
  %s1 = inlined_call_operand.vmem [shape: f32[3,4,1], index: 1, kind: input, shape index: {}]
  %s2 = inlined_call_operand.hbm [shape: f32[2,4,256], index: 2, kind: output, shape index: {}]
  %s3 = sld [smem:[#allocation0]]
  $region45: #{tpu_custom_call.1} parent=0
    _
  %s5 = ssub.s32 1, %s3
  %s6 = scalar_select 0, %s5, %s3
  $region1: #{tpu_custom_call.1} parent=0
    #allocation2 [shape = 'u8[8192]{0}', space=vmem, size = 0x2000, scoped, tag = 'input window, operand 0']
    #allocation3 [shape = 's32[2]{0}', space=sflag, size = 0x8, scoped, tag = 'scoped memory for tpu_custom_call.1']
    #allocation4 [shape = 's32[2]{0}', space=sflag, size = 0x8, scoped, tag = 'scoped memory for tpu_custom_call.1']
    #allocation5 [shape = 'u8[8192]{0}', space=vmem, size = 0x2000, scoped, tag = 'output window, operand 0']
    %7 = vsyncpa [#allocation3], 0
    %s8 = scalar_lea.sflag [#allocation3], 1
    %9 = vsyncpa %s8, 0
    %10 = vsyncpa [#allocation4], 0
    %s11 = scalar_lea.sflag [#allocation4], 1
    %12 = vsyncpa %s11, 0
    loop: start=0, step=1, limit=4
    $region2: #{tpu_custom_call.1} parent=1 // loop_pre_header
      _
    $region3: #{tpu_custom_call.1} parent=1 // loop_header
      %s14 = sphi 0, %s18
      %p15 = scmp.ge.s32.totalorder %s14, 4
      %s24 = sphi 0, %s26
      %s27 = sphi 0, %s24
      %s28 = sphi 0, %s27
      %s44 = sphi 0, %s28
      %s48 = sphi 0, %s48
      %s50 = sphi 0, %s48
      %s51 = sphi 0, %s50
      %s65 = sphi 0, %s51
      %s71 = sphi 0, %s73
      %s74 = sphi 0, %s71
      %s75 = sphi 0, %s74
      %s91 = sphi 0, %s75
    $region4: #{tpu_custom_call.1} parent=1 // loop_header_branch
      %17 = sbr.rel (%p15) target = $region8
    $region5: #{tpu_custom_call.1} parent=1 // loop_body
      %s19 = ssub.s32 %s14, 1
      %s20 = ssub.s32 %s14, 2
      %s21 = sadd.s32 %s14, 1
      %s22 = ssub.s32 %s14, %s21
      %p23 = scmp.eq.s32.totalorder %s22, 0
      %s25 = sadd.s32 %s24, 1
      %s26 = scalar_select %p23, %s24, %s25
      %p29 = pneg %p23
      %p30 = scmp.eq.s32.totalorder %s14, 1
      %p31 = por %p29, %p30
      %p32 = scmp.ne.s32.totalorder %s24, %s27
      %p33 = scmp.eq.s32.totalorder %s14, 0
      %p34 = por %p32, %p33
      %p35 = scmp.ne.s32.totalorder %s24, %s27
      %p36 = scmp.eq.s32.totalorder %s19, 1
      %p37 = por %p35, %p36
      %p38 = scmp.ne.s32.totalorder %s27, %s28
      %p39 = scmp.eq.s32.totalorder %s19, 0
      %p40 = por %p38, %p39
      %p41 = scmp.ne.s32.totalorder %s27, %s28
      %p42 = scmp.eq.s32.totalorder %s20, 1
      %p43 = por %p41, %p42
      %p45 = scmp.ne.s32.totalorder %s28, %s44
      %p46 = scmp.eq.s32.totalorder %s20, 0
      %p47 = por %p45, %p46
      %s49 = sadd.s32 %s48, 1
      %p52 = scmp.eq.s32.totalorder %s14, 1
      %p53 = scmp.ne.s32.totalorder %s48, %s50
      %p54 = scmp.eq.s32.totalorder %s14, 0
      %p55 = por %p53, %p54
      %p56 = scmp.ne.s32.totalorder %s48, %s50
      %p57 = scmp.eq.s32.totalorder %s19, 1
      %p58 = por %p56, %p57
      %p59 = scmp.ne.s32.totalorder %s50, %s51
      %p60 = scmp.eq.s32.totalorder %s19, 0
      %p61 = por %p59, %p60
      %p62 = scmp.ne.s32.totalorder %s50, %s51
      %p63 = scmp.eq.s32.totalorder %s20, 1
      %p64 = por %p62, %p63
      %p66 = scmp.ne.s32.totalorder %s51, %s65
      %p67 = scmp.eq.s32.totalorder %s20, 0
      %p68 = por %p66, %p67
      %s69 = ssub.s32 %s14, %s21
      %p70 = scmp.eq.s32.totalorder %s69, 0
      %s72 = sadd.s32 %s71, 1
      %s73 = scalar_select %p70, %s71, %s72
      %p76 = pneg %p70
      %p77 = scmp.eq.s32.totalorder %s14, 1
      %p78 = por %p76, %p77
      %p79 = scmp.ne.s32.totalorder %s71, %s74
      %p80 = scmp.eq.s32.totalorder %s14, 0
      %p81 = por %p79, %p80
      %p82 = scmp.ne.s32.totalorder %s71, %s74
      %p83 = scmp.eq.s32.totalorder %s19, 1
      %p84 = por %p82, %p83
      %p85 = scmp.ne.s32.totalorder %s74, %s75
      %p86 = scmp.eq.s32.totalorder %s19, 0
      %p87 = por %p85, %p86
      %p88 = scmp.ne.s32.totalorder %s74, %s75
      %p89 = scmp.eq.s32.totalorder %s20, 1
      %p90 = por %p88, %p89
      %p92 = scmp.ne.s32.totalorder %s75, %s91
      %p93 = scmp.eq.s32.totalorder %s20, 0
      %p94 = por %p92, %p93
      %p95 = scmp.le.s32.totalorder 1, %s14
      %p96 = scmp.lt.s32.totalorder %s14, 3
      %p97 = pnand %p95, %p96
      %p98 = pneg %p97
      // Predicated region
      $region9: #{tpu_custom_call.1} parent=5 // pred_check
        _
      $region10: #{tpu_custom_call.1} parent=5 // pred_check_branch
        %100 = sbr.rel (%p97) target = $region12
      $region11: #{tpu_custom_call.1} parent=5 // pred_region
        %s101 = ssub.s32 %s14, 1
        // Predicated region
        $region13: #{tpu_custom_call.1} parent=11 // pred_check
          %p102 = pneg %p61
        $region14: #{tpu_custom_call.1} parent=11 // pred_check_branch
          %104 = sbr.rel (%p102) target = $region16
        $region15: #{tpu_custom_call.1} parent=11 // pred_region
          _
        $region16: #{tpu_custom_call.1} parent=11 // pred_fallthru
          _
      $region12: #{tpu_custom_call.1} parent=5 // pred_fallthru
        _
      %p105 = scmp.lt.s32.totalorder %s14, 2
      // Predicated region
      $region17: #{tpu_custom_call.1} parent=5 // pred_check
        %p106 = pneg %p105
      $region18: #{tpu_custom_call.1} parent=5 // pred_check_branch
        %108 = sbr.rel (%p106) target = $region20
      $region19: #{tpu_custom_call.1} parent=5 // pred_region
        // Predicated region
        $region21: #{tpu_custom_call.1} parent=19 // pred_check
          %p109 = pneg %p34
        $region22: #{tpu_custom_call.1} parent=19 // pred_check_branch
          %111 = sbr.rel (%p109) target = $region24
        $region23: #{tpu_custom_call.1} parent=19 // pred_region
          %s112 = sand.u32 %s24, 1
          %s113 = scalar_lea.sflag [#allocation3], %s112
          %s114 = sand.u32 %s24, 1
          %s115 = smul.addr %s114, 8
          %s116 = scalar_lea.vmem [#allocation2], %s115
          %s118 = ssub.s32 128, 128
          %119 = vsyncadd %s113, %s118
          %s120 = smul.addr %s14, 2
          %s121 = smul.addr %s120, 64
          %s122 = scalar_lea.hbm %s0, %s121
          %s124 = sshll.u32 %s116, 4
          %s125 = int_to_ptr.vmem [resolvable:$true] %s124
          %127 = dma.hbm_to_vmem [thread:$0]  %s122, 128, %s125, %s113
        $region24: #{tpu_custom_call.1} parent=19 // pred_fallthru
          _
      $region20: #{tpu_custom_call.1} parent=5 // pred_fallthru
        _
      %p128 = scmp.le.s32.totalorder 1, %s14
      %p129 = scmp.lt.s32.totalorder %s14, 3
      %p130 = pnand %p128, %p129
      %p131 = pneg %p130
      // Predicated region
      $region25: #{tpu_custom_call.1} parent=5 // pred_check
        _
      $region26: #{tpu_custom_call.1} parent=5 // pred_check_branch
        %133 = sbr.rel (%p130) target = $region28
      $region27: #{tpu_custom_call.1} parent=5 // pred_region
        %s134 = ssub.s32 %s14, 1
        %s135 = sand.u32 %s27, 1
        %s136 = scalar_lea.sflag [#allocation3], %s135
        %s137 = sand.u32 %s27, 1
        %s138 = smul.addr %s137, 8
        %s139 = scalar_lea.vmem [#allocation2], %s138
        // Predicated region
        $region29: #{tpu_custom_call.1} parent=27 // pred_check
          %p140 = pneg %p40
        $region30: #{tpu_custom_call.1} parent=27 // pred_check_branch
          %142 = sbr.rel (%p140) target = $region32
        $region31: #{tpu_custom_call.1} parent=27 // pred_region
          %143 = dma.done %s136, 128
        $region32: #{tpu_custom_call.1} parent=27 // pred_fallthru
          _
        %s144 = sand.u32 %s27, 1
        %s145 = scalar_lea.sflag [#allocation3], %s144
        %s146 = sand.u32 %s27, 1
        %s147 = smul.addr %s146, 8
        %s148 = scalar_lea.vmem [#allocation2], %s147
        %p149 = pneg %p40
        %p150 = pneg %p37
        %p151 = pneg %p61
        %p152 = pneg %p58
        %p153 = pneg %p87
        %p154 = pneg %p84
        %s155 = sand.u32 %s74, 1
        %s156 = scalar_lea.sflag [#allocation4], %s155
        %s157 = sand.u32 %s74, 1
        %s158 = smul.addr %s157, 8
        %s159 = scalar_lea.vmem [#allocation5], %s158
        %v160 = vld [vmem:[%s139] sm:$0xff]
        %v162 = vcombine.high %v160, %v160
        %vm164 = vcmask 1043456
        %v165 = vsel %vm164, %v160, 0.0
        %v166 = vsel %vm164, %v162, 0.0
        %v167 = vadd.f32 %v165, %v166
        %168 = vadd.xlane.f32.xlu0 %v167
        %v169 = vpop.xlane.xlu0 %168
        %v170 = vmul.f32 %v169, 0.00390625
        %v173 = vunpack.c.l.s4 839922192
        %v174 = vunpack.c.0.s8 %v173
        %v175 = vlaneseq
        %v176 = vshrl.u32 %v175, 7
        %v177 = vsub.s32 %v174, %v176
        %v178 = vrot.slane %v170, %v177
        %v180 = vsub.f32 %v160, %v178
        %v181 = vmul.f32 %v180, %v180
        %v183 = vcombine.high %v181, %v181
        %v185 = vsel %vm164, %v181, 0.0
        %v186 = vsel %vm164, %v183, 0.0
        %v187 = vadd.f32 %v185, %v186
        %188 = vadd.xlane.f32.xlu0 %v187
        %v189 = vpop.xlane.xlu0 %188
        %v190 = vmul.f32 %v189, 0.003921569
        %v191 = vsel %vm164, %v170, 0.0
        %v192 = vrot.slane %v191, 4
        %v193 = vadd.f32 %v191, %v192
        %v194 = vrot.slane %v193, 2
        %v195 = vadd.f32 %v193, %v194
        %v196 = vrot.slane %v195, 1
        %v197 = vadd.f32 %v195, %v196
        %v198 = vrcp.pop 4.0
        %v199 = vmul.f32 %v197, %v198
        %v200 = vsub.f32 %v170, %v199
        %v201 = vmul.f32 %v200, 256.0
        %v202 = vmul.f32 %v201, %v200
        %v203 = vadd.f32 %v189, %v202
        %v204 = vsel %vm164, %v203, 0.0
        %v205 = vrot.slane %v204, 4
        %v206 = vadd.f32 %v204, %v205
        %v207 = vrot.slane %v206, 2
        %v208 = vadd.f32 %v206, %v207
        %v209 = vrot.slane %v208, 1
        %v210 = vadd.f32 %v208, %v209
        %v211 = vmul.f32 %v210, 0.0009775171
        %v212 = vadd.f32 %v190, 1e-05
        %v213 = vrsqrt.pop %v212
        %v214 = vadd.f32 %v211, 1e-05
        %v215 = vrsqrt.pop %v214
        %v216 = vld [vmem:[%s1] sm:$0xf]
        %v217 = vld [vmem:[%s1 + $0x4] sm:$0xf]
        %v218 = vld [vmem:[%s1 + $0x8] sm:$0xf]
        %v219 = vmul.f32 %v216, %v213
        %v220 = vmul.f32 %v217, %v215
        %v221 = vadd.f32 %v219, %v220
        %v222 = vmul.f32 %v219, %v170
        %v223 = vsub.f32 %v218, %v222
        %v224 = vmul.f32 %v220, %v199
        %v225 = vsub.f32 %v223, %v224
        %227 = vset.pattern.permute.xlu0 0
        %228 = vperm.xlu0 %227, %v221
        %v229 = vpop.permute.xlu0 %228
        %v231 = vmul.f32 %v229, %v160
        %v232 = vmul.f32 %v229, %v162
        %234 = vset.pattern.permute.xlu0 0
        %235 = vperm.xlu0 %234, %v225
        %v236 = vpop.permute.xlu0 %235
        %v238 = vadd.f32 %v231, %v236
        %v239 = vadd.f32 %v232, %v236
        %v242 = vcombine.low %v238, %v239
        %244 = vst [vmem:[%s159] sm:$0xff] %v242
        %s245 = sand.u32 %s74, 1
        %s246 = scalar_lea.sflag [#allocation4], %s245
        %s247 = sand.u32 %s74, 1
        %s248 = smul.addr %s247, 8
        %s249 = scalar_lea.vmem [#allocation5], %s248
        // Predicated region
        $region33: #{tpu_custom_call.1} parent=27 // pred_check
          %p250 = pneg %p84
        $region34: #{tpu_custom_call.1} parent=27 // pred_check_branch
          %252 = sbr.rel (%p250) target = $region36
        $region35: #{tpu_custom_call.1} parent=27 // pred_region
          %s254 = ssub.s32 128, 128
          %255 = vsyncadd %s246, %s254
          %s256 = smul.addr %s19, 2
          %s257 = smul.addr %s256, 64
          %s258 = scalar_lea.hbm %s2, %s257
          %s260 = sshll.u32 %s249, 4
          %s261 = int_to_ptr.vmem [resolvable:$true] %s260
          %263 = dma.vmem_to_hbm [thread:$0]  %s261, 128, %s258, %s246
        $region36: #{tpu_custom_call.1} parent=27 // pred_fallthru
          _
      $region28: #{tpu_custom_call.1} parent=5 // pred_fallthru
        _
      %p264 = scmp.le.s32.totalorder 2, %s14
      // Predicated region
      $region37: #{tpu_custom_call.1} parent=5 // pred_check
        %p265 = pneg %p264
      $region38: #{tpu_custom_call.1} parent=5 // pred_check_branch
        %267 = sbr.rel (%p265) target = $region40
      $region39: #{tpu_custom_call.1} parent=5 // pred_region
        %s268 = ssub.s32 %s14, 2
        // Predicated region
        $region41: #{tpu_custom_call.1} parent=39 // pred_check
          %p269 = pneg %p90
        $region42: #{tpu_custom_call.1} parent=39 // pred_check_branch
          %271 = sbr.rel (%p269) target = $region44
        $region43: #{tpu_custom_call.1} parent=39 // pred_region
          %s272 = sand.u32 %s75, 1
          %s273 = scalar_lea.sflag [#allocation4], %s272
          %s274 = sand.u32 %s75, 1
          %s275 = smul.addr %s274, 8
          %s276 = scalar_lea.vmem [#allocation5], %s275
          %277 = dma.done %s273, 128
        $region44: #{tpu_custom_call.1} parent=39 // pred_fallthru
          _
      $region40: #{tpu_custom_call.1} parent=5 // pred_fallthru
        _
    $region6: #{tpu_custom_call.1} parent=1 // loop_footer
      %s18 = sadd.s32 1, %s14
    $region7: #{tpu_custom_call.1} parent=1 // loop_footer_branch
      %13 = sbr.rel target = $region3
    $region8: #{tpu_custom_call.1} parent=1 // loop_exit
      _
    %278 = vsyncpa [#allocation3], 1
    %s279 = scalar_lea.sflag [#allocation3], 1
    %280 = vsyncpa %s279, 1
    %281 = vsyncpa [#allocation4], 1
    %s282 = scalar_lea.sflag [#allocation4], 1
    %283 = vsyncpa %s282, 1

</llo_original>
